<compile_context>
chip_gen: v7x
topology: tpu7x:2x2x1
jax: 0.10.0
libtpu: 0.0.40
codegen_flags: <defaults>
</compile_context>

<pallas_src>
import functools

import jax
import jax.numpy as jnp
from jax import lax
from jax.experimental import pallas as pl
from jax.experimental.pallas import tpu as pltpu


def _vmem_capacity_bytes():
    """Physical per-core VMEM; falls back to the smallest current part (v7x,
    64 MiB) so tiling stays safe if the query is unavailable."""
    try:
        info = pltpu.get_tpu_info()
        cap = int(getattr(info, "vmem_capacity_bytes", 0) or 0)
        if cap > 0:
            return cap
    except Exception:
        pass
    return 64 * 1024 * 1024


def _per_step_vmem_bytes(c, t, in_itemsize, mm_itemsize, fused):
    """Honest per-grid-step footprint: double-buffered raw inputs plus the
    in-kernel temporaries (normalized operands, stacked fused operand,
    transient f32 squares for the norm) plus the f32 accumulator(s)."""
    inputs = 2 * 2 * c * t * in_itemsize            # 2 tensors x 2 pipeline bufs
    normed = 2 * c * t * mm_itemsize                # normalized matmul operands
    stacked = (2 * c * t * mm_itemsize) if fused else 0   # concat([fs_n, ft_n])
    squares = 2 * c * t * 4                         # f32 x*x transients (norms)
    acc = (4 if fused else 3) * c * c * 4           # (2C,2C) or 3 x (C,C) f32
    return inputs + normed + stacked + squares + acc + (1 << 20)


def _pick_block_hw(hw128, c, in_itemsize, mm_itemsize, fused, budget):
    """Largest spatial tile (multiple of 128 lanes) whose per-step footprint
    fits `budget`; prefers the whole (padded) spatial slab."""
    def fits(t):
        return _per_step_vmem_bytes(c, t, in_itemsize, mm_itemsize, fused) <= budget
    if fits(hw128):
        return hw128
    lo, hi = 1, hw128 // 128
    while lo < hi:                      # footprint is monotone in t
        mid = (lo + hi + 1) // 2
        if fits(128 * mid):
            lo = mid
        else:
            hi = mid - 1
    return 128 * lo


def _normalized_operand(x, matmul_dtype, approx_recip):
    """Per-spatial-position L2 over channels (f32 accumulation) fused into a
    single scale in the matmul operand dtype."""
    sq = x * x
    if sq.dtype != jnp.float32:
        sq = sq.astype(jnp.float32)
    norm = jnp.sqrt(jnp.sum(sq, axis=0, keepdims=True)) + 1e-8    # (1, T)
    if approx_recip:
        inv = pl.reciprocal(norm, approx=True)   # EUP slot (otherwise idle)
    else:
        inv = 1.0 / norm                         # exact f32 fidelity path
    if x.dtype == jnp.float32 and matmul_dtype != jnp.float32:
        return (x * inv).astype(matmul_dtype)    # normalize in f32, downcast
    return x.astype(matmul_dtype) * inv.astype(matmul_dtype)


def _pairwise_kernel_fused(fs_ref, ft_ref, loss_ref, acc_ref, *,
                           c, inv_scale, matmul_dtype, approx_recip):
    h = pl.program_id(1)

    @pl.when(h == 0)
    def _():
        acc_ref[...] = jnp.zeros_like(acc_ref)

    fs_n = _normalized_operand(fs_ref[0], matmul_dtype, approx_recip)
    ft_n = _normalized_operand(ft_ref[0], matmul_dtype, approx_recip)

    # One (2C, K) x (K, 2C) MXU pass per chunk: M = Z Z^T with Z = [Z_s; Z_t]
    # holds A_ss, A_st, A_ts, A_tt simultaneously.
    z = jnp.concatenate([fs_n, ft_n], axis=0)                 # (2C, T)
    dims = (((1,), (1,)), ((), ()))
    acc_ref[...] += lax.dot_general(z, z, dims,
                                    preferred_element_type=jnp.float32)

    @pl.when(h == pl.num_programs(1) - 1)
    def _():
        # +1 on the diagonal blocks (A_ss, A_tt), -1 on the off-diagonal
        # blocks (A_st, A_ts)  =>  ||A_tt||^2 + ||A_ss||^2 - 2||A_st||^2.
        m = acc_ref[...]
        n = m.shape[0]
        ri = lax.broadcasted_iota(jnp.int32, (n, n), 0)
        ci = lax.broadcasted_iota(jnp.int32, (n, n), 1)
        sign = jnp.where((ri < c) == (ci < c), 1.0, -1.0)
        total = jnp.sum(sign * m * m) * inv_scale
        loss_ref[...] = jnp.zeros_like(loss_ref) + total


def _pairwise_kernel_split(fs_ref, ft_ref, loss_ref,
                           a_ss_ref, a_tt_ref, a_st_ref, *,
                           inv_scale, matmul_dtype, approx_recip):
    h = pl.program_id(1)

    @pl.when(h == 0)
    def _():
        a_ss_ref[...] = jnp.zeros_like(a_ss_ref)
        a_tt_ref[...] = jnp.zeros_like(a_tt_ref)
        a_st_ref[...] = jnp.zeros_like(a_st_ref)

    fs_n = _normalized_operand(fs_ref[0], matmul_dtype, approx_recip)
    ft_n = _normalized_operand(ft_ref[0], matmul_dtype, approx_recip)

    dims = (((1,), (1,)), ((), ()))
    a_ss_ref[...] += lax.dot_general(fs_n, fs_n, dims,
                                     preferred_element_type=jnp.float32)
    a_tt_ref[...] += lax.dot_general(ft_n, ft_n, dims,
                                     preferred_element_type=jnp.float32)
    a_st_ref[...] += lax.dot_general(fs_n, ft_n, dims,
                                     preferred_element_type=jnp.float32)

    @pl.when(h == pl.num_programs(1) - 1)
    def _():
        total = (jnp.sum(a_tt_ref[...] ** 2)
                 + jnp.sum(a_ss_ref[...] ** 2)
                 - 2.0 * jnp.sum(a_st_ref[...] ** 2)) * inv_scale
        loss_ref[...] = jnp.zeros_like(loss_ref) + total


def pairwise_sim_loss(feat_S, feat_T, *, block_hw=None, matmul_dtype=None,
                      fuse_grams=None):
    """sim_dis_compute(feat_S, feat_T) where features are NCHW."""
    B, C, H, W = feat_T.shape
    assert feat_S.shape == feat_T.shape
    HW = H * W
    inv_scale = 1.0 / (float(HW) ** 2 * float(B))

    if matmul_dtype is None:
        # f32 inputs: exact f32 MXU path (torch .float() fidelity). Lower
        # precision inputs: bf16 operands with f32 accumulation. Passing
        # matmul_dtype=jnp.bfloat16 explicitly is the speed knob for f32 data.
        matmul_dtype = (jnp.float32 if feat_T.dtype == jnp.float32
                        else jnp.bfloat16)
    matmul_dtype = jnp.dtype(matmul_dtype)
    approx_recip = bool(matmul_dtype != jnp.dtype(jnp.float32))

    # Pad channels to a sublane multiple (zero channels are exact no-ops for
    # both the norm and the Grams) so the fused stacked operand and all
    # accesses stay (8,128)-aligned.  Real feature maps (C % 8 == 0) pay 0.
    C_pad = max(8, -(-C // 8) * 8)

    # Fuse the 3 CxC matmuls into one (2C,2C) when 2C fits the MXU width.
    # (On v5e's 128-wide MXU the ideal cutoff is 2C <= 128, but the fused form
    # still wins on accumulator/issue traffic, so keep the threshold uniform.)
    fuse = (2 * C_pad <= 256) if fuse_grams is None else bool(fuse_grams)

    in_itemsize = jnp.dtype(feat_T.dtype).itemsize
    mm_itemsize = matmul_dtype.itemsize

    # Generation-aware VMEM budget: 3/4 of physical per-core VMEM
    # (~96 MiB on v5e/v6e, ~48 MiB on v7x).  Always set vmem_limit_bytes
    # explicitly — the default scoped limit (16-32 MiB) is the binding
    # constraint otherwise, especially on v5e.
    vmem_cap = _vmem_capacity_bytes()
    vmem_limit = (3 * vmem_cap) // 4
    budget = vmem_limit - (2 << 20)

    hw128 = -(-HW // 128) * 128
    if block_hw is None:
        block_hw = _pick_block_hw(hw128, C_pad, in_itemsize, mm_itemsize,
                                  fuse, budget)
    if block_hw >= HW:
        block_hw = hw128          # whole (padded) spatial slab in one step
    elif block_hw % 128 != 0:
        raise ValueError("block_hw must be a multiple of 128 or >= H*W")

    # Zero-pad the spatial axis to a multiple of the tile (zero columns
    # normalize to exactly zero and contribute nothing) and channels to C_pad.
    hw_padded = -(-HW // block_hw) * block_hw
    num_hw = hw_padded // block_hw

    xs = feat_S.reshape(B, C, HW)
    xt = feat_T.reshape(B, C, HW)
    if C_pad != C or hw_padded != HW:
        pad = ((0, 0), (0, C_pad - C), (0, hw_padded - HW))
        xs = jnp.pad(xs, pad)
        xt = jnp.pad(xt, pad)

    # Make sure the scoped limit covers the chosen tile even in degenerate
    # cases (huge C at minimum tile), without exceeding physical VMEM.
    step_bytes = _per_step_vmem_bytes(C_pad, block_hw, in_itemsize,
                                      mm_itemsize, fuse)
    vmem_limit = int(min(max(vmem_limit, step_bytes + (2 << 20)),
                         int(0.95 * vmem_cap)))

    common = dict(inv_scale=inv_scale, matmul_dtype=matmul_dtype,
                  approx_recip=approx_recip)
    if fuse:
        kernel = functools.partial(_pairwise_kernel_fused, c=C_pad, **common)
        scratch = [pltpu.VMEM((2 * C_pad, 2 * C_pad), jnp.float32)]
    else:
        kernel = functools.partial(_pairwise_kernel_split, **common)
        scratch = [pltpu.VMEM((C_pad, C_pad), jnp.float32),
                   pltpu.VMEM((C_pad, C_pad), jnp.float32),
                   pltpu.VMEM((C_pad, C_pad), jnp.float32)]

    partials = pl.pallas_call(
        kernel,
        out_shape=jax.ShapeDtypeStruct((B, 1, 1), jnp.float32),
        grid_spec=pltpu.PrefetchScalarGridSpec(
            num_scalar_prefetch=0,
            grid=(B, num_hw),
            in_specs=[
                pl.BlockSpec((1, C_pad, block_hw), lambda b, h: (b, 0, h)),
                pl.BlockSpec((1, C_pad, block_hw), lambda b, h: (b, 0, h)),
            ],
            out_specs=pl.BlockSpec((1, 1, 1), lambda b, h: (b, 0, 0)),
            scratch_shapes=scratch,
        ),
        compiler_params=pltpu.CompilerParams(
            dimension_semantics=("parallel", "arbitrary"),
            vmem_limit_bytes=vmem_limit,
        ),
    )(xs, xt)

    # Per-batch partial losses summed in XLA (keeps the batch axis
    # core-parallel for v7x megacore).
    return jnp.sum(partials)


class CriterionPairWiseforWholeFeatAfterPool:
    """JAX/Pallas port.  The reference forward() derives patch sizes from
    `scale` but never uses them (no pooling is applied before the loss)."""

    def __init__(self, scale, feat_ind):
        self.scale = scale
        self.feat_ind = feat_ind

    def __call__(self, preds_S, preds_T):
        feat_S = preds_S[self.feat_ind]
        feat_T = preds_T[self.feat_ind]
        total_w, total_h = feat_T.shape[2], feat_T.shape[3]
        patch_w, patch_h = int(total_w * self.scale), int(total_h * self.scale)  # noqa: F841 (unused, as in torch)
        return pairwise_sim_loss(feat_S, feat_T)


def _reference_loss(feat_S, feat_T):
    """Pure-JAX reference mirroring the PyTorch code (direct HW x HW form)."""
    def similarity(feat):
        feat = feat.astype(jnp.float32)
        norm = jnp.sqrt(jnp.sum(feat ** 2, axis=1, keepdims=True)) + 1e-8
        feat = feat / norm
        B, C = feat.shape[0], feat.shape[1]
        feat = feat.reshape(B, C, -1)
        return jnp.einsum("icm,icn->imn", feat, feat,
                          precision=lax.Precision.HIGHEST)

    sim_err = (similarity(feat_T) - similarity(feat_S)) ** 2
    sim_err = sim_err / (feat_T.shape[-1] * feat_T.shape[-2]) ** 2 / feat_T.shape[0]
    return jnp.sum(sim_err)


if __name__ == "__main__":
    key = jax.random.PRNGKey(0)
    k1, k2, k3, k4 = jax.random.split(key, 4)

    B, C, H, W = 2, 4, 16, 16
    feat_S = jax.random.normal(k1, (B, C, H, W), dtype=jnp.float32)
    feat_T = jax.random.normal(k2, (B, C, H, W), dtype=jnp.float32)

    preds_S = [feat_S]
    preds_T = [feat_T]

    criterion = CriterionPairWiseforWholeFeatAfterPool(scale=0.5, feat_ind=0)
    loss = jax.block_until_ready(criterion(preds_S, preds_T))
    ref = jax.block_until_ready(_reference_loss(feat_S, feat_T))
    assert jnp.allclose(loss, ref, rtol=1e-4, atol=1e-6), (loss, ref)

    # Multi-chunk HW streaming path (2 chunks of 128 lane-dense positions).
    loss_chunked = jax.block_until_ready(
        pairwise_sim_loss(feat_S, feat_T, block_hw=128))
    assert jnp.allclose(loss_chunked, ref, rtol=1e-4, atol=1e-6), (loss_chunked, ref)

    # Unfused (3 x CxC) fallback kernel (used when 2C exceeds the MXU width).
    loss_unfused = jax.block_until_ready(
        pairwise_sim_loss(feat_S, feat_T, fuse_grams=False))
    assert jnp.allclose(loss_unfused, ref, rtol=1e-4, atol=1e-6), (loss_unfused, ref)

    # Non-(8,128)-aligned shapes: C=5 and HW=90 are zero-padded (loss-exact).
    fS_odd = jax.random.normal(k3, (1, 5, 9, 10), dtype=jnp.float32)
    fT_odd = jax.random.normal(k4, (1, 5, 9, 10), dtype=jnp.float32)
    loss_odd = jax.block_until_ready(pairwise_sim_loss(fS_odd, fT_odd))
    ref_odd = jax.block_until_ready(_reference_loss(fS_odd, fT_odd))
    assert jnp.allclose(loss_odd, ref_odd, rtol=1e-4, atol=1e-6), (loss_odd, ref_odd)

    # bf16 inputs: bf16-operand MXU path with f32 accumulation + approx recip.
    fs_bf16 = feat_S.astype(jnp.bfloat16)
    ft_bf16 = feat_T.astype(jnp.bfloat16)
    loss_bf16 = jax.block_until_ready(pairwise_sim_loss(fs_bf16, ft_bf16))
    ref_bf16 = jax.block_until_ready(_reference_loss(fs_bf16, ft_bf16))
    assert jnp.allclose(loss_bf16, ref_bf16, rtol=1e-1, atol=1e-3), (loss_bf16, ref_bf16)

    print("KERNEL_OK")
</pallas_src>

<mosaic_0001>
module attributes {stable_mosaic.version = 11 : i64} {
  func.func @_pairwise_kernel_fused(%arg0: i32, %arg1: i32, %arg2: memref<1x8x256xf32, #tpu.memory_space<vmem>>, %arg3: memref<1x8x256xf32, #tpu.memory_space<vmem>>, %arg4: memref<1x1x1xf32, #tpu.memory_space<vmem>>, %arg5: memref<16x16xf32, #tpu.memory_space<vmem>>) attributes {dimension_semantics = [#tpu.dimension_semantics<parallel>, #tpu.dimension_semantics<arbitrary>], iteration_bounds = array<i64: 2, 1>, scalar_prefetch = 0 : i64, scratch_operands = 1 : i64, tpu.core_type = #tpu.core_type<tc>, window_params = [{transform_indices = @transform_0, window_bounds = array<i64: 1, 8, 256>}, {transform_indices = @transform_1, window_bounds = array<i64: 1, 8, 256>}, {transform_indices = @transform_2, window_bounds = array<i64: 1, 1, 1>}]} {
    %c0_i32 = arith.constant 0 : i32
    %0 = arith.cmpi eq, %arg1, %c0_i32 : i32
    %1 = arith.extui %0 : i1 to i32
    %c0_i32_0 = arith.constant 0 : i32
    %2 = arith.cmpi ne, %1, %c0_i32_0 : i32
    scf.if %2 {
      %cst_18 = arith.constant 0.000000e+00 : f32
      %35 = vector.broadcast %cst_18 : f32 to vector<16x16xf32>
      %c0_19 = arith.constant 0 : index
      %c0_20 = arith.constant 0 : index
      %36 = vector.load %arg5[%c0_19, %c0_20] : memref<16x16xf32, #tpu.memory_space<vmem>>, vector<16x16xf32>
      tpu.vector_store %arg5[%c0_19, %c0_20], %35 {strides = array<i32>} : memref<16x16xf32, #tpu.memory_space<vmem>>, vector<16x16xf32>,
    } else {
    }
    %c0 = arith.constant 0 : index
    %c0_1 = arith.constant 0 : index
    %c0_2 = arith.constant 0 : index
    %3 = vector.load %arg2[%c0, %c0_1, %c0_2] : memref<1x8x256xf32, #tpu.memory_space<vmem>>, vector<1x8x256xf32>
    %4 = vector.shape_cast %3 : vector<1x8x256xf32> to vector<8x256xf32>
    %5 = arith.mulf %4, %4 : vector<8x256xf32>
    %cst = arith.constant dense<0.000000e+00> : vector<256xf32>
    %6 = vector.multi_reduction <add>, %5, %cst [0] : vector<8x256xf32> to vector<256xf32>
    %7 = vector.shape_cast %6 : vector<256xf32> to vector<1x256xf32>
    %8 = math.sqrt %7 : vector<1x256xf32>
    %cst_3 = arith.constant 9.99999993E-9 : f32
    %9 = vector.broadcast %cst_3 : f32 to vector<1x256xf32>
    %10 = arith.addf %8, %9 : vector<1x256xf32>
    %cst_4 = arith.constant 1.000000e+00 : f32
    %11 = vector.broadcast %cst_4 : f32 to vector<1x256xf32>
    %12 = arith.divf %11, %10 : vector<1x256xf32>
    %13 = vector.broadcast %12 : vector<1x256xf32> to vector<8x256xf32>
    %14 = arith.mulf %4, %13 : vector<8x256xf32>
    %c0_5 = arith.constant 0 : index
    %c0_6 = arith.constant 0 : index
    %c0_7 = arith.constant 0 : index
    %15 = vector.load %arg3[%c0_5, %c0_6, %c0_7] : memref<1x8x256xf32, #tpu.memory_space<vmem>>, vector<1x8x256xf32>
    %16 = vector.shape_cast %15 : vector<1x8x256xf32> to vector<8x256xf32>
    %17 = arith.mulf %16, %16 : vector<8x256xf32>
    %cst_8 = arith.constant dense<0.000000e+00> : vector<256xf32>
    %18 = vector.multi_reduction <add>, %17, %cst_8 [0] : vector<8x256xf32> to vector<256xf32>
    %19 = vector.shape_cast %18 : vector<256xf32> to vector<1x256xf32>
    %20 = math.sqrt %19 : vector<1x256xf32>
    %cst_9 = arith.constant 9.99999993E-9 : f32
    %21 = vector.broadcast %cst_9 : f32 to vector<1x256xf32>
    %22 = arith.addf %20, %21 : vector<1x256xf32>
    %cst_10 = arith.constant 1.000000e+00 : f32
    %23 = vector.broadcast %cst_10 : f32 to vector<1x256xf32>
    %24 = arith.divf %23, %22 : vector<1x256xf32>
    %25 = vector.broadcast %24 : vector<1x256xf32> to vector<8x256xf32>
    %26 = arith.mulf %16, %25 : vector<8x256xf32>
    %27 = tpu.concatenate %14, %26 in 0 : vector<8x256xf32>, vector<8x256xf32> -> vector<16x256xf32>
    %c0_11 = arith.constant 0 : index
    %c0_12 = arith.constant 0 : index
    %28 = vector.load %arg5[%c0_11, %c0_12] : memref<16x16xf32, #tpu.memory_space<vmem>>, vector<16x16xf32>
    %cst_13 = arith.constant dense<0.000000e+00> : vector<16x16xf32>
    %29 = tpu.matmul %27, %27, %cst_13 {dimension_numbers = #tpu.dot_dimension_numbers<[1], [1], [0], [0], [0, 0, 1, 0], [], []>} : vector<16x256xf32>, vector<16x256xf32>, vector<16x16xf32> -> vector<16x16xf32>
    %30 = arith.addf %28, %29 : vector<16x16xf32>
    %c0_14 = arith.constant 0 : index
    %c0_15 = arith.constant 0 : index
    %31 = vector.load %arg5[%c0_14, %c0_15] : memref<16x16xf32, #tpu.memory_space<vmem>>, vector<16x16xf32>
    tpu.vector_store %arg5[%c0_14, %c0_15], %30 {strides = array<i32>} : memref<16x16xf32, #tpu.memory_space<vmem>>, vector<16x16xf32>,
    %c0_i32_16 = arith.constant 0 : i32
    %32 = arith.cmpi eq, %arg1, %c0_i32_16 : i32
    %33 = arith.extui %32 : i1 to i32
    %c0_i32_17 = arith.constant 0 : i32
    %34 = arith.cmpi ne, %33, %c0_i32_17 : i32
    scf.if %34 {
      %c0_18 = arith.constant 0 : index
      %c0_19 = arith.constant 0 : index
      %35 = vector.load %arg5[%c0_18, %c0_19] : memref<16x16xf32, #tpu.memory_space<vmem>>, vector<16x16xf32>
      %36 = tpu.iota {dimensions = array<i32: 0>} : vector<16x16xi32>
      %37 = tpu.iota {dimensions = array<i32: 1>} : vector<16x16xi32>
      %c8_i32 = arith.constant 8 : i32
      %38 = vector.broadcast %c8_i32 : i32 to vector<16x16xi32>
      %39 = arith.cmpi slt, %36, %38 : vector<16x16xi32>
      %c8_i32_20 = arith.constant 8 : i32
      %40 = vector.broadcast %c8_i32_20 : i32 to vector<16x16xi32>
      %41 = arith.cmpi slt, %37, %40 : vector<16x16xi32>
      %42 = arith.xori %39, %41 : vector<16x16xi1>
      %cst_21 = arith.constant dense<true> : vector<16x16xi1>
      %43 = arith.xori %42, %cst_21 : vector<16x16xi1>
      %cst_22 = arith.constant 1.000000e+00 : f32
      %cst_23 = arith.constant -1.000000e+00 : f32
      %44 = vector.broadcast %cst_22 : f32 to vector<16x16xf32>
      %45 = vector.broadcast %cst_23 : f32 to vector<16x16xf32>
      %46 = arith.select %43, %44, %45 : vector<16x16xi1>, vector<16x16xf32>
      %47 = arith.mulf %46, %35 : vector<16x16xf32>
      %48 = arith.mulf %47, %35 : vector<16x16xf32>
      %49 = vector.shape_cast %48 : vector<16x16xf32> to vector<1x16x16xf32>
      %cst_24 = arith.constant dense<0.000000e+00> : vector<1xf32>
      %50 = vector.multi_reduction <add>, %49, %cst_24 [1, 2] : vector<1x16x16xf32> to vector<1xf32>
      %51 = vector.shape_cast %50 : vector<1xf32> to vector<1x1x1xf32>
      %52 = vector.extract %51[0, 0, 0] : f32 from vector<1x1x1xf32>
      %cst_25 = arith.constant 7.62939453E-6 : f32
      %53 = arith.mulf %52, %cst_25 : f32
      %cst_26 = arith.constant 0.000000e+00 : f32
      %54 = vector.broadcast %cst_26 : f32 to vector<1x1x1xf32>
      %55 = vector.broadcast %53 : f32 to vector<1x1x1xf32>
      %56 = arith.addf %54, %55 : vector<1x1x1xf32>
      %c0_27 = arith.constant 0 : index
      %c0_28 = arith.constant 0 : index
      %c0_29 = arith.constant 0 : index
      %57 = vector.load %arg4[%c0_27, %c0_28, %c0_29] : memref<1x1x1xf32, #tpu.memory_space<vmem>>, vector<1x1x1xf32>
      tpu.vector_store %arg4[%c0_27, %c0_28, %c0_29], %56 {strides = array<i32>} : memref<1x1x1xf32, #tpu.memory_space<vmem>>, vector<1x1x1xf32>,
    } else {
    }
    return
  }
  func.func @transform_0(%arg0: i32, %arg1: i32) -> (i32, i32, i32) {
    %c0_i32 = arith.constant 0 : i32
    %c0_i32_0 = arith.constant 0 : i32
    return %arg0, %c0_i32, %arg1 : i32, i32, i32
  }
  func.func @transform_1(%arg0: i32, %arg1: i32) -> (i32, i32, i32) {
    %c0_i32 = arith.constant 0 : i32
    %c0_i32_0 = arith.constant 0 : i32
    return %arg0, %c0_i32, %arg1 : i32, i32, i32
  }
  func.func @transform_2(%arg0: i32, %arg1: i32) -> (i32, i32, i32) {
    %c0_i32 = arith.constant 0 : i32
    %c0_i32_0 = arith.constant 0 : i32
    %c0_i32_1 = arith.constant 0 : i32
    return %arg0, %c0_i32, %c0_i32_0 : i32, i32, i32
  }
}

</mosaic_0001>

<llo_original>
// kernel: tpu_custom_call.1
$region0: #{tpu_custom_call.1}
  #allocation0 [shape = 'u32[]', space=smem, size = 0x4, offset = 0x4, fixed_abs, tag = 'smem constant byte address 0x4 - core index']
  #allocation1 [shape = 'u32[144,128]{1,0:T(1,128)}', space=vmem, size = 0x12000, scoped, tag = 'internal scratch']
  #allocation2 [shape = 'f32[16,16]{1,0:T(8,128)}', space=vmem, size = 0x2000, scoped, tag = 'scratch operand']
  %s0 = inlined_call_operand.hbm [shape: f32[2,8,256], index: 0, kind: input, shape index: {}]
  %s1 = inlined_call_operand.hbm [shape: f32[2,8,256], index: 1, kind: input, shape index: {}]
  %s2 = inlined_call_operand.vmem [shape: f32[2,1,1], index: 2, kind: output, shape index: {}]
  %s3 = sld [smem:[#allocation0]]
  $region57: #{tpu_custom_call.1} parent=0
    _
  %s5 = ssub.s32 1, %s3
  %s6 = scalar_select 0, %s5, %s3
  $region1: #{tpu_custom_call.1} parent=0
    #allocation3 [shape = 'u8[16384]{0}', space=vmem, size = 0x4000, scoped, tag = 'input window, operand 0']
    #allocation4 [shape = 's32[2]{0}', space=sflag, size = 0x8, scoped, tag = 'scoped memory for tpu_custom_call.1']
    #allocation5 [shape = 'u8[16384]{0}', space=vmem, size = 0x4000, scoped, tag = 'input window, operand 1']
    #allocation6 [shape = 's32[2]{0}', space=sflag, size = 0x8, scoped, tag = 'scoped memory for tpu_custom_call.1']
    %7 = vsyncpa [#allocation4], 0
    %s8 = scalar_lea.sflag [#allocation4], 1
    %9 = vsyncpa %s8, 0
    %10 = vsyncpa [#allocation6], 0
    %s11 = scalar_lea.sflag [#allocation6], 1
    %12 = vsyncpa %s11, 0
    loop: start=0, step=1, limit=4
    $region2: #{tpu_custom_call.1} parent=1 // loop_pre_header
      _
    $region3: #{tpu_custom_call.1} parent=1 // loop_header
      %s14 = sphi 0, %s18
      %p15 = scmp.ge.s32.totalorder %s14, 4
      %s21 = sphi 0, %s33
      %s22 = sphi 0, %s29
      %s23 = sphi 0, %s21
      %s24 = sphi 0, %s22
      %s25 = sphi 0, %s23
      %s26 = sphi 0, %s24
      %s38 = sphi 0, %s40
      %s41 = sphi 0, %s38
      %s42 = sphi 0, %s41
      %s58 = sphi 0, %s42
      %s66 = sphi 0, %s68
      %s69 = sphi 0, %s66
      %s70 = sphi 0, %s69
      %s86 = sphi 0, %s70
      %s92 = sphi 0, %s94
      %s95 = sphi 0, %s92
      %s96 = sphi 0, %s95
      %s112 = sphi 0, %s96
    $region4: #{tpu_custom_call.1} parent=1 // loop_header_branch
      %17 = sbr.rel (%p15) target = $region8
    $region5: #{tpu_custom_call.1} parent=1 // loop_body
      %s19 = ssub.s32 %s14, 1
      %s20 = ssub.s32 %s14, 2
      %s27 = sadd.s32 1, %s22
      %p28 = scmp.ge.s32.totalorder %s27, 1
      %s29 = scalar_select %p28, 0, %s27
      %s30 = sadd.s32 1, %s21
      %s31 = scalar_select %p28, %s30, %s21
      %p32 = scmp.ge.s32.totalorder %s31, 2
      %s33 = scalar_select %p32, 0, %s31
      %s34 = ssub.s32 %s21, %s33
      %s35 = ssub.s32 %s22, %s29
      %s36 = sor.u32 %s34, %s35
      %p37 = scmp.eq.s32.totalorder %s36, 0
      %s39 = sadd.s32 %s38, 1
      %s40 = scalar_select %p37, %s38, %s39
      %p43 = pneg %p37
      %p44 = scmp.eq.s32.totalorder %s14, 1
      %p45 = por %p43, %p44
      %p46 = scmp.ne.s32.totalorder %s38, %s41
      %p47 = scmp.eq.s32.totalorder %s14, 0
      %p48 = por %p46, %p47
      %p49 = scmp.ne.s32.totalorder %s38, %s41
      %p50 = scmp.eq.s32.totalorder %s19, 1
      %p51 = por %p49, %p50
      %p52 = scmp.ne.s32.totalorder %s41, %s42
      %p53 = scmp.eq.s32.totalorder %s19, 0
      %p54 = por %p52, %p53
      %p55 = scmp.ne.s32.totalorder %s41, %s42
      %p56 = scmp.eq.s32.totalorder %s20, 1
      %p57 = por %p55, %p56
      %p59 = scmp.ne.s32.totalorder %s42, %s58
      %p60 = scmp.eq.s32.totalorder %s20, 0
      %p61 = por %p59, %p60
      %s62 = ssub.s32 %s21, %s33
      %s63 = ssub.s32 %s22, %s29
      %s64 = sor.u32 %s62, %s63
      %p65 = scmp.eq.s32.totalorder %s64, 0
      %s67 = sadd.s32 %s66, 1
      %s68 = scalar_select %p65, %s66, %s67
      %p71 = pneg %p65
      %p72 = scmp.eq.s32.totalorder %s14, 1
      %p73 = por %p71, %p72
      %p74 = scmp.ne.s32.totalorder %s66, %s69
      %p75 = scmp.eq.s32.totalorder %s14, 0
      %p76 = por %p74, %p75
      %p77 = scmp.ne.s32.totalorder %s66, %s69
      %p78 = scmp.eq.s32.totalorder %s19, 1
      %p79 = por %p77, %p78
      %p80 = scmp.ne.s32.totalorder %s69, %s70
      %p81 = scmp.eq.s32.totalorder %s19, 0
      %p82 = por %p80, %p81
      %p83 = scmp.ne.s32.totalorder %s69, %s70
      %p84 = scmp.eq.s32.totalorder %s20, 1
      %p85 = por %p83, %p84
      %p87 = scmp.ne.s32.totalorder %s70, %s86
      %p88 = scmp.eq.s32.totalorder %s20, 0
      %p89 = por %p87, %p88
      %s90 = ssub.s32 %s21, %s33
      %p91 = scmp.eq.s32.totalorder %s90, 0
      %s93 = sadd.s32 %s92, 1
      %s94 = scalar_select %p91, %s92, %s93
      %p97 = pneg %p91
      %p98 = scmp.eq.s32.totalorder %s14, 1
      %p99 = por %p97, %p98
      %p100 = scmp.ne.s32.totalorder %s92, %s95
      %p101 = scmp.eq.s32.totalorder %s14, 0
      %p102 = por %p100, %p101
      %p103 = scmp.ne.s32.totalorder %s92, %s95
      %p104 = scmp.eq.s32.totalorder %s19, 1
      %p105 = por %p103, %p104
      %p106 = scmp.ne.s32.totalorder %s95, %s96
      %p107 = scmp.eq.s32.totalorder %s19, 0
      %p108 = por %p106, %p107
      %p109 = scmp.ne.s32.totalorder %s95, %s96
      %p110 = scmp.eq.s32.totalorder %s20, 1
      %p111 = por %p109, %p110
      %p113 = scmp.ne.s32.totalorder %s96, %s112
      %p114 = scmp.eq.s32.totalorder %s20, 0
      %p115 = por %p113, %p114
      %p116 = scmp.le.s32.totalorder 1, %s14
      %p117 = scmp.lt.s32.totalorder %s14, 3
      %p118 = pnand %p116, %p117
      %p119 = pneg %p118
      // Predicated region
      $region9: #{tpu_custom_call.1} parent=5 // pred_check
        _
      $region10: #{tpu_custom_call.1} parent=5 // pred_check_branch
        %121 = sbr.rel (%p118) target = $region12
      $region11: #{tpu_custom_call.1} parent=5 // pred_region
        %s122 = ssub.s32 %s14, 1
      $region12: #{tpu_custom_call.1} parent=5 // pred_fallthru
        _
      %p123 = scmp.lt.s32.totalorder %s14, 2
      // Predicated region
      $region13: #{tpu_custom_call.1} parent=5 // pred_check
        %p124 = pneg %p123
      $region14: #{tpu_custom_call.1} parent=5 // pred_check_branch
        %126 = sbr.rel (%p124) target = $region16
      $region15: #{tpu_custom_call.1} parent=5 // pred_region
        // Predicated region
        $region17: #{tpu_custom_call.1} parent=15 // pred_check
          %p127 = pneg %p48
        $region18: #{tpu_custom_call.1} parent=15 // pred_check_branch
          %129 = sbr.rel (%p127) target = $region20
        $region19: #{tpu_custom_call.1} parent=15 // pred_region
          %s130 = sand.u32 %s38, 1
          %s131 = scalar_lea.sflag [#allocation4], %s130
          %s132 = sand.u32 %s38, 1
          %s133 = smul.addr %s132, 16
          %s134 = scalar_lea.vmem [#allocation3], %s133
          %s135 = smul.u32 2, %s22
          %s137 = ssub.s32 256, 256
          %138 = vsyncadd %s131, %s137
          %s139 = smul.addr %s21, 2
          %s140 = sadd.s32 %s135, %s139
          %s141 = smul.addr %s140, 128
          %s142 = scalar_lea.hbm %s0, %s141
          %s144 = sshll.u32 %s134, 4
          %s145 = int_to_ptr.vmem [resolvable:$true] %s144
          %147 = dma.hbm_to_vmem [thread:$0]  %s142, 256, %s145, %s131
        $region20: #{tpu_custom_call.1} parent=15 // pred_fallthru
          _
        // Predicated region
        $region21: #{tpu_custom_call.1} parent=15 // pred_check
          %p148 = pneg %p76
        $region22: #{tpu_custom_call.1} parent=15 // pred_check_branch
          %150 = sbr.rel (%p148) target = $region24
        $region23: #{tpu_custom_call.1} parent=15 // pred_region
          %s151 = sand.u32 %s66, 1
          %s152 = scalar_lea.sflag [#allocation6], %s151
          %s153 = sand.u32 %s66, 1
          %s154 = smul.addr %s153, 16
          %s155 = scalar_lea.vmem [#allocation5], %s154
          %s156 = smul.u32 2, %s22
          %s158 = ssub.s32 256, 256
          %159 = vsyncadd %s152, %s158
          %s160 = smul.addr %s21, 2
          %s161 = sadd.s32 %s156, %s160
          %s162 = smul.addr %s161, 128
          %s163 = scalar_lea.hbm %s1, %s162
          %s165 = sshll.u32 %s155, 4
          %s166 = int_to_ptr.vmem [resolvable:$true] %s165
          %168 = dma.hbm_to_vmem [thread:$0]  %s163, 256, %s166, %s152
        $region24: #{tpu_custom_call.1} parent=15 // pred_fallthru
          _
      $region16: #{tpu_custom_call.1} parent=5 // pred_fallthru
        _
      %p169 = scmp.le.s32.totalorder 1, %s14
      %p170 = scmp.lt.s32.totalorder %s14, 3
      %p171 = pnand %p169, %p170
      %p172 = pneg %p171
      // Predicated region
      $region25: #{tpu_custom_call.1} parent=5 // pred_check
        _
      $region26: #{tpu_custom_call.1} parent=5 // pred_check_branch
        %174 = sbr.rel (%p171) target = $region28
      $region27: #{tpu_custom_call.1} parent=5 // pred_region
        %s175 = ssub.s32 %s14, 1
        %s176 = sand.u32 %s41, 1
        %s177 = scalar_lea.sflag [#allocation4], %s176
        %s178 = sand.u32 %s41, 1
        %s179 = smul.addr %s178, 16
        %s180 = scalar_lea.vmem [#allocation3], %s179
        // Predicated region
        $region29: #{tpu_custom_call.1} parent=27 // pred_check
          %p181 = pneg %p54
        $region30: #{tpu_custom_call.1} parent=27 // pred_check_branch
          %183 = sbr.rel (%p181) target = $region32
        $region31: #{tpu_custom_call.1} parent=27 // pred_region
          %184 = dma.done %s177, 256
        $region32: #{tpu_custom_call.1} parent=27 // pred_fallthru
          _
        %s185 = sand.u32 %s69, 1
        %s186 = scalar_lea.sflag [#allocation6], %s185
        %s187 = sand.u32 %s69, 1
        %s188 = smul.addr %s187, 16
        %s189 = scalar_lea.vmem [#allocation5], %s188
        // Predicated region
        $region33: #{tpu_custom_call.1} parent=27 // pred_check
          %p190 = pneg %p82
        $region34: #{tpu_custom_call.1} parent=27 // pred_check_branch
          %192 = sbr.rel (%p190) target = $region36
        $region35: #{tpu_custom_call.1} parent=27 // pred_region
          %193 = dma.done %s186, 256
        $region36: #{tpu_custom_call.1} parent=27 // pred_fallthru
          _
        %s194 = sand.u32 %s41, 1
        %s195 = scalar_lea.sflag [#allocation4], %s194
        %s196 = sand.u32 %s41, 1
        %s197 = smul.addr %s196, 16
        %s198 = scalar_lea.vmem [#allocation3], %s197
        %p199 = pneg %p54
        %p200 = pneg %p51
        %s201 = sand.u32 %s69, 1
        %s202 = scalar_lea.sflag [#allocation6], %s201
        %s203 = sand.u32 %s69, 1
        %s204 = smul.addr %s203, 16
        %s205 = scalar_lea.vmem [#allocation5], %s204
        %p206 = pneg %p82
        %p207 = pneg %p79
        %p208 = pneg %p108
        %p209 = pneg %p105
        %p210 = scmp.lt.s32.totalorder %s23, 1
        %s211 = scalar_select %p210, %s23, 1
        %s212 = scalar_lea.vmem %s2, %s211
        %s213 = smul.u32 2, %s24
        %s214 = smul.u32 2, %s24
        %p215 = scmp.lt.s32.totalorder %s23, 1
        %s216 = scalar_select %p215, %s23, 1
        %s217 = scalar_lea.vmem %s2, %s216
        %p218 = scmp.eq.s32.totalorder %s24, 0
        // Predicated region
        $region37: #{tpu_custom_call.1} parent=27 // pred_check
          %p219 = pneg %p218
        $region38: #{tpu_custom_call.1} parent=27 // pred_check_branch
          %221 = sbr.rel (%p219) target = $region40
        $region39: #{tpu_custom_call.1} parent=27 // pred_region
          %vm222 = vcmask 130048
          %223 = vst.msk [vmem:[#allocation2] sm:$0xff] %vm222, 0.0
          %224 = vst.msk [vmem:[#allocation2 + $0x8] sm:$0xff] %vm222, 0.0
        $region40: #{tpu_custom_call.1} parent=27 // pred_fallthru
          _
        %v225 = vld [vmem:[%s180] sm:$0xff]
        %v226 = vld [vmem:[%s180 + $0x8] sm:$0xff]
        %v227 = vmul.f32 %v225, %v225
        %v228 = vmul.f32 %v226, %v226
        %v229 = vrot.slane %v227, 4
        %v230 = vadd.f32 %v227, %v229
        %v231 = vrot.slane %v230, 2
        %v232 = vadd.f32 %v230, %v231
        %v233 = vrot.slane %v232, 1
        %v234 = vadd.f32 %v232, %v233
        %v235 = vrot.slane %v228, 4
        %v236 = vadd.f32 %v228, %v235
        %v237 = vrot.slane %v236, 2
        %v238 = vadd.f32 %v236, %v237
        %v239 = vrot.slane %v238, 1
        %v240 = vadd.f32 %v238, %v239
        %v241 = vrsqrt.pop %v234
        %v242 = vmul.f32 %v234, %v241
        %vm243 = vcmp.eq.f32.partialorder %v234, inf
        %v244 = vsel %vm243, %v234, %v242
        %vm245 = vcmp.eq.f32.partialorder %v234, 0.0
        %v246 = vand.u32 %v234, 2147483648
        %v247 = vsel %vm245, %v246, %v244
        %v248 = vrsqrt.pop %v240
        %v249 = vmul.f32 %v240, %v248
        %vm250 = vcmp.eq.f32.partialorder %v240, inf
        %v251 = vsel %vm250, %v240, %v249
        %vm252 = vcmp.eq.f32.partialorder %v240, 0.0
        %v253 = vand.u32 %v240, 2147483648
        %v254 = vsel %vm252, %v253, %v251
        %v255 = vadd.f32 %v247, 1e-08
        %v256 = vadd.f32 %v254, 1e-08
        %v257 = vrcp.pop %v255
        %v258 = vmul.f32 1.0, %v257
        %v259 = vrcp.pop %v256
        %v260 = vmul.f32 1.0, %v259
        %v261 = vmul.f32 %v225, %v258
        %v262 = vmul.f32 %v226, %v260
        %v263 = vld [vmem:[%s189] sm:$0xff]
        %v264 = vld [vmem:[%s189 + $0x8] sm:$0xff]
        %v265 = vmul.f32 %v263, %v263
        %v266 = vmul.f32 %v264, %v264
        %v267 = vrot.slane %v265, 4
        %v268 = vadd.f32 %v265, %v267
        %v269 = vrot.slane %v268, 2
        %v270 = vadd.f32 %v268, %v269
        %v271 = vrot.slane %v270, 1
        %v272 = vadd.f32 %v270, %v271
        %v273 = vrot.slane %v266, 4
        %v274 = vadd.f32 %v266, %v273
        %v275 = vrot.slane %v274, 2
        %v276 = vadd.f32 %v274, %v275
        %v277 = vrot.slane %v276, 1
        %v278 = vadd.f32 %v276, %v277
        %v279 = vrsqrt.pop %v272
        %v280 = vmul.f32 %v272, %v279
        %vm281 = vcmp.eq.f32.partialorder %v272, inf
        %v282 = vsel %vm281, %v272, %v280
        %vm283 = vcmp.eq.f32.partialorder %v272, 0.0
        %v284 = vand.u32 %v272, 2147483648
        %v285 = vsel %vm283, %v284, %v282
        %v286 = vrsqrt.pop %v278
        %v287 = vmul.f32 %v278, %v286
        %vm288 = vcmp.eq.f32.partialorder %v278, inf
        %v289 = vsel %vm288, %v278, %v287
        %vm290 = vcmp.eq.f32.partialorder %v278, 0.0
        %v291 = vand.u32 %v278, 2147483648
        %v292 = vsel %vm290, %v291, %v289
        %v293 = vadd.f32 %v285, 1e-08
        %v294 = vadd.f32 %v292, 1e-08
        %v295 = vrcp.pop %v293
        %v296 = vmul.f32 1.0, %v295
        %v297 = vrcp.pop %v294
        %v298 = vmul.f32 1.0, %v297
        %v299 = vmul.f32 %v263, %v296
        %v300 = vmul.f32 %v264, %v298
        %v301 = vld [vmem:[#allocation2] sm:$0xff]
        %v302 = vld [vmem:[#allocation2 + $0x8] sm:$0xff]
        %303 = vmatprep.subr.mxu0 %v262
        %304 = vmatpush1.xpose.msra.mxu0 %v261
        %305 = vmatprep.subr.mxu0 %v300
        %306 = vmatpush1.xpose.msra.mxu0 %v299
        %307 = vmatprep.subr.mxu0 0.0
        %308 = vmatpush1.xpose.msra.mxu0 0.0
        %309 = vmatprep.subr.mxu0 0.0
        %310 = vmatpush1.xpose.msra.mxu0 0.0
        %311 = vmatprep.subr.mxu0 0.0
        %312 = vmatpush1.xpose.msra.mxu0 0.0
        %313 = vmatprep.subr.mxu0 0.0
        %314 = vmatpush1.xpose.msra.mxu0 0.0
        %315 = vmatprep.subr.mxu0 0.0
        %316 = vmatpush1.xpose.msra.mxu0 0.0
        %317 = vmatprep.subr.mxu0 0.0
        %318 = vmatpush1.xpose.msra.mxu0 0.0
        %319 = vmatprep.subr.mxu0 0.0
        %320 = vmatpush1.xpose.msra.mxu0 0.0
        %321 = vmatprep.subr.mxu0 0.0
        %322 = vmatpush1.xpose.msra.mxu0 0.0
        %323 = vmatprep.subr.mxu0 0.0
        %324 = vmatpush1.xpose.msra.mxu0 0.0
        %325 = vmatprep.subr.mxu0 0.0
        %326 = vmatpush1.xpose.msra.mxu0 0.0
        %327 = vmatprep.subr.mxu0 0.0
        %328 = vmatpush1.xpose.msra.mxu0 0.0
        %329 = vmatprep.subr.mxu0 0.0
        %330 = vmatpush1.xpose.msra.mxu0 0.0
        %331 = vmatprep.subr.mxu0 0.0
        %332 = vmatpush1.xpose.msra.mxu0 0.0
        %333 = vmatprep.subr.mxu0 0.0
        %334 = vmatpush1.xpose.msra.mxu0 0.0
        %335 = vmatprep.subr.mxu0 0.0
        %336 = vmatpush1.xpose.msra.mxu0 0.0
        %337 = vmatprep.subr.mxu0 0.0
        %338 = vmatpush1.xpose.msra.mxu0 0.0
        %339 = vmatprep.subr.mxu0 0.0
        %340 = vmatpush1.xpose.msra.mxu0 0.0
        %341 = vmatprep.subr.mxu0 0.0
        %342 = vmatpush1.xpose.msra.mxu0 0.0
        %343 = vmatprep.subr.mxu0 0.0
        %344 = vmatpush1.xpose.msra.mxu0 0.0
        %345 = vmatprep.subr.mxu0 0.0
        %346 = vmatpush1.xpose.msra.mxu0 0.0
        %347 = vmatprep.subr.mxu0 0.0
        %348 = vmatpush1.xpose.msra.mxu0 0.0
        %349 = vmatprep.subr.mxu0 0.0
        %350 = vmatpush1.xpose.msra.mxu0 0.0
        %351 = vmatprep.subr.mxu0 0.0
        %352 = vmatpush1.xpose.msra.mxu0 0.0
        %353 = vmatprep.subr.mxu0 0.0
        %354 = vmatpush1.xpose.msra.mxu0 0.0
        %355 = vmatprep.subr.mxu0 0.0
        %356 = vmatpush1.xpose.msra.mxu0 0.0
        %357 = vmatprep.subr.mxu0 0.0
        %358 = vmatpush1.xpose.msra.mxu0 0.0
        %359 = vmatprep.subr.mxu0 0.0
        %360 = vmatpush1.xpose.msra.mxu0 0.0
        %361 = vmatprep.subr.mxu0 0.0
        %362 = vmatpush1.xpose.msra.mxu0 0.0
        %363 = vmatprep.subr.mxu0 0.0
        %364 = vmatpush1.xpose.msra.mxu0 0.0
        %365 = vmatprep.subr.mxu0 0.0
        %366 = vmatpush1.xpose.msra.mxu0 0.0
        %367 = vmatprep.mubr.f32.mxu0 %v262
        %368 = vmatmul.mubr.f32.gmra.mrb[0].mxu0 %v261
        %v369 = vpop.f32.mrb[0].mxu0
        %v370 = vadd.f32 0.0, %v369
        %v371 = vpop.f32.mrb[0].mxu0
        %372 = vmatprep.mubr.f32.mxu0 %v300
        %373 = vmatmul.mubr.f32.gmra.mrb[0].mxu0 %v299
        %v374 = vpop.f32.mrb[0].mxu0
        %v375 = vadd.f32 0.0, %v374
        %v376 = vpop.f32.mrb[0].mxu0
        %377 = vdwg.mxu0
        %v378 = vadd.f32 %v301, %v370
        %v379 = vadd.f32 %v302, %v375
        %vm380 = vcmask 130048
        %381 = vst.msk [vmem:[#allocation2] sm:$0xff] %vm380, %v378
        %382 = vst.msk [vmem:[#allocation2 + $0x8] sm:$0xff] %vm380, %v379
        // Predicated region
        $region41: #{tpu_custom_call.1} parent=27 // pred_check
          %p383 = pneg %p218
        $region42: #{tpu_custom_call.1} parent=27 // pred_check_branch
          %385 = sbr.rel (%p383) target = $region44
        $region43: #{tpu_custom_call.1} parent=27 // pred_region
          %v386 = vld [vmem:[#allocation2] sm:$0xff]
          %v387 = vld [vmem:[#allocation2 + $0x8] sm:$0xff]
          %v388 = vlaneseq
          %v389 = vshrl.u32 %v388, 7
          %v390 = vadd.s32 %v389, 8
          %v391 = vlaneseq
          %v392 = vand.u32 %v391, 127
          %vm393 = vcmp.lt.s32.totalorder %v389, 8
          %vm394 = vcmp.lt.s32.totalorder %v390, 8
          %vm395 = vcmp.lt.s32.totalorder %v392, 8
          %vm396 = vmxor %vm393, %vm395
          %vm397 = vmxor %vm394, %vm395
          %vm398 = vmxor %vm396, 1
          %vm399 = vmxor %vm397, 1
          %v400 = vsel %vm398, 1.0, -1.0
          %v401 = vsel %vm399, 1.0, -1.0
          %v402 = vmul.f32 %v400, %v386
          %v403 = vmul.f32 %v401, %v387
          %v404 = vmul.f32 %v402, %v386
          %v405 = vmul.f32 %v403, %v387
          %v406 = vsel %vm380, %v404, 0.0
          %v407 = vsel %vm380, %v405, 0.0
          %v408 = vadd.f32 %v406, %v407
          %409 = vadd.xlane.f32.xlu0 %v408
          %v410 = vpop.xlane.xlu0 %409
          %v411 = vrot.slane %v410, 4
          %v412 = vadd.f32 %v410, %v411
          %v413 = vrot.slane %v412, 2
          %v414 = vadd.f32 %v412, %v413
          %v415 = vrot.slane %v414, 1
          %v416 = vadd.f32 %v414, %v415
          %s417 = vtos %v416
          %s418 = smul.f32 %s417, 7.6293945e-06
          %v419 = vstv %s418
          %v420 = vadd.f32 %v419, 0.0
          %vm421 = vcmask 0
          %422 = vst.msk [vmem:[%s217] sm:$0x1] %vm421, %v420
        $region44: #{tpu_custom_call.1} parent=27 // pred_fallthru
          _
        %p423 = scmp.lt.s32.totalorder %s23, 1
        %s424 = scalar_select %p423, %s23, 1
        %s425 = scalar_lea.vmem %s2, %s424
        // Predicated region
        $region45: #{tpu_custom_call.1} parent=27 // pred_check
          %p426 = pneg %p105
        $region46: #{tpu_custom_call.1} parent=27 // pred_check_branch
          %428 = sbr.rel (%p426) target = $region48
        $region47: #{tpu_custom_call.1} parent=27 // pred_region
          _
        $region48: #{tpu_custom_call.1} parent=27 // pred_fallthru
          _
      $region28: #{tpu_custom_call.1} parent=5 // pred_fallthru
        _
      %p429 = scmp.le.s32.totalorder 2, %s14
      // Predicated region
      $region49: #{tpu_custom_call.1} parent=5 // pred_check
        %p430 = pneg %p429
      $region50: #{tpu_custom_call.1} parent=5 // pred_check_branch
        %432 = sbr.rel (%p430) target = $region52
      $region51: #{tpu_custom_call.1} parent=5 // pred_region
        %s433 = ssub.s32 %s14, 2
        // Predicated region
        $region53: #{tpu_custom_call.1} parent=51 // pred_check
          %p434 = pneg %p111
        $region54: #{tpu_custom_call.1} parent=51 // pred_check_branch
          %436 = sbr.rel (%p434) target = $region56
        $region55: #{tpu_custom_call.1} parent=51 // pred_region
          %p437 = scmp.lt.s32.totalorder %s25, 1
          %s438 = scalar_select %p437, %s25, 1
          %s439 = scalar_lea.vmem %s2, %s438
        $region56: #{tpu_custom_call.1} parent=51 // pred_fallthru
          _
      $region52: #{tpu_custom_call.1} parent=5 // pred_fallthru
        _
    $region6: #{tpu_custom_call.1} parent=1 // loop_footer
      %s18 = sadd.s32 1, %s14
    $region7: #{tpu_custom_call.1} parent=1 // loop_footer_branch
      %13 = sbr.rel target = $region3
    $region8: #{tpu_custom_call.1} parent=1 // loop_exit
      _
    %440 = vsyncpa [#allocation4], 1
    %s441 = scalar_lea.sflag [#allocation4], 1
    %442 = vsyncpa %s441, 1
    %443 = vsyncpa [#allocation6], 1
    %s444 = scalar_lea.sflag [#allocation6], 1
    %445 = vsyncpa %s444, 1

</llo_original>
